<compile_context>
chip_gen: v6e
topology: v6e:2x2x1
jax: 0.10.0
libtpu: 0.0.40
codegen_flags: <defaults>
</compile_context>

<pallas_src>
import functools
import math

import jax
import jax.numpy as jnp
from jax import lax
from jax.experimental import pallas as pl
from jax.experimental.pallas import tpu as pltpu

BOXES_PER_ROW = 128                   # boxes per lane-row
LANES = 4 * BOXES_PER_ROW             # 512-wide lane-dense minor axis (interleaved l,t,r,b)
ROW_ALIGN = 16                        # rows padded to a multiple of 16 (bf16-safe sublane tiling)
MAX_BLOCK_ROWS = 1024                 # up to 1024 rows * 128 boxes = 131072 boxes / grid step


def _round_up(x, m):
    return (x + m - 1) // m * m


@functools.lru_cache(maxsize=None)
def _roll_shifts():
    """Resolve pltpu.roll's direction once; return static shifts realizing
    out[j] = x[j + 2] and out[j] = x[j + 1] along a 512-wide lane axis."""

    def probe(x_ref, o_ref):
        o_ref[...] = pltpu.roll(x_ref[...], 1, 1)

    x = lax.broadcasted_iota(jnp.float32, (8, 128), 1)
    out = pl.pallas_call(
        probe, out_shape=jax.ShapeDtypeStruct((8, 128), jnp.float32))(x)
    jnp_like = float(out[0, 1]) == 0.0    # jnp.roll semantics: out[i] = x[i - shift]
    if jnp_like:
        return LANES - 2, LANES - 1
    return 2, 1


def _onehot_select(x_f32, sel_bf16):
    """Column-selects x_f32[:, 4b] -> out[:, b] exactly (to ~f32 precision) via three bf16
    MXU passes (hi/mid/lo split).  Runs on the otherwise idle MXU, keeping the VALU free."""
    hi = x_f32.astype(jnp.bfloat16)
    r1 = x_f32 - hi.astype(jnp.float32)
    mid = r1.astype(jnp.bfloat16)
    lo = (r1 - mid.astype(jnp.float32)).astype(jnp.bfloat16)
    acc = jnp.dot(hi, sel_bf16, preferred_element_type=jnp.float32)
    acc = acc + jnp.dot(mid, sel_bf16, preferred_element_type=jnp.float32)
    acc = acc + jnp.dot(lo, sel_bf16, preferred_element_type=jnp.float32)
    return acc


def _iou_loss_kernel(*refs, shift2, shift1, has_weight, want_elem, need_mask, last_rows):
    it = iter(refs)
    pred_ref = next(it)
    tgt_ref = next(it)
    w_ref = next(it) if has_weight else None
    need_compact = want_elem or has_weight
    sel_ref = next(it) if need_compact else None
    out_ref = next(it)

    p = pred_ref[...].astype(jnp.float32)
    t = tgt_ref[...].astype(jnp.float32)

    # Lane j (j % 4 == 0) of a row holds `left` of box (row*128 + j//4); lanes j+1/j+2/j+3
    # hold top/right/bottom.  Coordinates are paired with cheap XLU lane rotations.
    m = jnp.minimum(p, t)
    sp = p + pltpu.roll(p, shift2, 1) + 1.0                      # c0: l+r+1, c1: t+b+1 (pred)
    st = t + pltpu.roll(t, shift2, 1) + 1.0                      # (target)
    si = jnp.maximum(m + pltpu.roll(m, shift2, 1) + 1.0, 1.0)    # c0: w_int, c1: h_int
    pred_area = sp * pltpu.roll(sp, shift1, 1)                   # valid at c0 lanes
    tgt_area = st * pltpu.roll(st, shift1, 1)
    area_i = si * pltpu.roll(si, shift1, 1)                      # >= 1 on every lane
    union = tgt_area + pred_area - area_i

    # Junk lanes (j % 4 != 0) would feed garbage into log(); route them through iou == 1 so
    # their loss is exactly 0 (zero-padded boxes also yield loss 0 at c0 lanes).
    lane = lax.broadcasted_iota(jnp.int32, union.shape, 1)
    union = jnp.where((lane & 3) == 0, union, area_i)
    loss = -jnp.log(area_i / union)                              # (tr, 512)

    if need_compact:
        vals = _onehot_select(loss, sel_ref[...])                # (tr, 128): box b at lane b
        if has_weight:
            vals = vals * w_ref[...].astype(jnp.float32)
    else:
        vals = loss                                              # junk lanes already exactly 0

    if want_elem:
        out_ref[...] = vals
        return

    def emit(v):
        r8 = lax.broadcasted_iota(jnp.int32, (8, 128), 0)
        c8 = lax.broadcasted_iota(jnp.int32, (8, 128), 1)
        out_ref[...] = jnp.where((r8 == 0) & (c8 == 0), jnp.sum(v), 0.0)

    if not need_mask:
        emit(vals)                                               # no ragged edge anywhere
    else:
        last = pl.num_programs(0) - 1

        @pl.when(pl.program_id(0) != last)
        def _():                                                 # interior blocks: no row mask
            emit(vals)

        @pl.when(pl.program_id(0) == last)
        def _():                                                 # only the last block masks rows
            r = lax.broadcasted_iota(jnp.int32, vals.shape, 0)
            emit(jnp.where(r < last_rows, vals, 0.0))


def _maybe_f32(x):
    x = jnp.asarray(x)
    if x.dtype != jnp.float32 and x.dtype != jnp.bfloat16:
        x = x.astype(jnp.float32)                                # stream f32/bf16 as-is
    return x


@functools.partial(
    jax.jit,
    static_argnames=("reduction", "loss_weight", "avg_factor", "shift2", "shift1"))
def _iou_loss_impl(pred, target, weight, *, reduction, loss_weight, avg_factor,
                   shift2, shift1):
    if reduction not in ("none", "mean", "sum"):
        raise ValueError(f"unsupported reduction: {reduction!r}")
    if avg_factor is not None and reduction == "sum":
        raise ValueError('avg_factor can not be used with reduction="sum"')
    # NOTE: like mmdet, avg_factor is ignored for reduction="none".

    pred = _maybe_f32(pred)
    target = _maybe_f32(target)
    lead_shape = pred.shape[:-1]
    n = int(math.prod(lead_shape)) if lead_shape else 1

    p2 = pred.reshape(n, 4)
    t2 = target.reshape(n, 4)
    has_weight = weight is not None
    if has_weight:
        w = jnp.broadcast_to(_maybe_f32(weight), lead_shape).reshape(n)

    boxes_align = BOXES_PER_ROW * ROW_ALIGN                      # 2048 boxes
    n_pad = max(boxes_align, _round_up(n, boxes_align))
    if n_pad != n:
        # TODO(synk): this zero-pad is one extra XLA pass when n % 2048 != 0; a fully ragged
        # manual-DMA path would avoid it.
        p2 = jnp.pad(p2, ((0, n_pad - n), (0, 0)))
        t2 = jnp.pad(t2, ((0, n_pad - n), (0, 0)))
        if has_weight:
            w = jnp.pad(w, (0, n_pad - n))

    rows = n_pad // BOXES_PER_ROW                                # multiple of 16
    # Big blocks (amortize per-step overhead) but keep grid_n >= 2 when possible so v7x's
    # two TensorCores both get work under the 'parallel' grid axis.
    tr = max(ROW_ALIGN, min(MAX_BLOCK_ROWS, _round_up(pl.cdiv(rows, 2), ROW_ALIGN)))
    grid_n = pl.cdiv(rows, tr)
    need_mask = (rows % tr) != 0
    last_rows = rows - (grid_n - 1) * tr
    want_elem = reduction == "none"
    need_compact = want_elem or has_weight

    operands = [p2.reshape(rows, LANES), t2.reshape(rows, LANES)]
    in_specs = [pl.BlockSpec((tr, LANES), lambda g: (g, 0)),
                pl.BlockSpec((tr, LANES), lambda g: (g, 0))]
    if has_weight:
        operands.append(w.reshape(rows, BOXES_PER_ROW))          # un-expanded: 4 B/box
        in_specs.append(pl.BlockSpec((tr, BOXES_PER_ROW), lambda g: (g, 0)))
    if need_compact:
        # One-hot selection matrix sel[4b, b] = 1 (bf16, 128 KiB, resident across grid steps).
        ri = lax.broadcasted_iota(jnp.int32, (LANES, BOXES_PER_ROW), 0)
        ci = lax.broadcasted_iota(jnp.int32, (LANES, BOXES_PER_ROW), 1)
        operands.append((ri == 4 * ci).astype(jnp.bfloat16))
        in_specs.append(pl.BlockSpec((LANES, BOXES_PER_ROW), lambda g: (0, 0)))

    if want_elem:
        out_rows = grid_n * tr                                   # over-allocated: full block stores
        out_specs = pl.BlockSpec((tr, BOXES_PER_ROW), lambda g: (g, 0))
        out_shape = jax.ShapeDtypeStruct((out_rows, BOXES_PER_ROW), jnp.float32)
    else:
        out_specs = pl.BlockSpec((8, 128), lambda g: (g, 0))
        out_shape = jax.ShapeDtypeStruct((8 * grid_n, 128), jnp.float32)

    in_bytes = sum(int(op.size) * op.dtype.itemsize for op in operands)
    out_bytes = 4 * math.prod(out_shape.shape)
    flops = 30 * rows * LANES
    if need_compact:
        flops += 6 * rows * LANES * BOXES_PER_ROW                # 3 bf16 selection passes
    cost = pl.CostEstimate(flops=flops, transcendentals=rows * LANES,
                           bytes_accessed=in_bytes + out_bytes)

    kernel = functools.partial(
        _iou_loss_kernel, shift2=shift2, shift1=shift1, has_weight=has_weight,
        want_elem=want_elem, need_mask=need_mask, last_rows=last_rows)

    out = pl.pallas_call(
        kernel,
        grid=(grid_n,),
        in_specs=in_specs,
        out_specs=out_specs,
        out_shape=out_shape,
        compiler_params=pltpu.CompilerParams(
            dimension_semantics=("parallel",),
            vmem_limit_bytes=48 * 1024 * 1024),
        cost_estimate=cost,
    )(*operands)

    if reduction == "none":
        loss = out.reshape(-1)[:n].reshape(lead_shape)           # compact slab -> lead shape
    else:
        total = jnp.sum(out)
        if reduction == "sum":
            loss = total
        else:  # 'mean': mmdet divides by numel, or by avg_factor when given
            denom = jnp.float32(n if avg_factor is None else avg_factor)
            loss = total / denom
    return loss_weight * loss


def iou_loss_pallas(pred, target, weight=None, avg_factor=None,
                    reduction="mean", loss_weight=1.0):
    """Forward pass matching IoULoss(reduction, loss_weight)(pred, target, weight)."""
    # TODO(synk): torch's data-dependent early return
    #   `if weight is not None and not torch.any(weight > 0): return (pred*weight).sum()`
    # is not replicated under jit.
    shift2, shift1 = _roll_shifts()
    return _iou_loss_impl(pred, target, weight, reduction=reduction,
                          loss_weight=float(loss_weight),
                          avg_factor=avg_factor, shift2=shift2, shift1=shift1)


def _iou_loss_ref(pred, target):
    pred = jnp.asarray(pred, jnp.float32)
    target = jnp.asarray(target, jnp.float32)
    p_l, p_t, p_r, p_b = (pred[..., i] for i in range(4))
    t_l, t_t, t_r, t_b = (target[..., i] for i in range(4))
    target_area = (t_l + t_r + 1.0) * (t_t + t_b + 1.0)
    pred_area = (p_l + p_r + 1.0) * (p_t + p_b + 1.0)
    w_i = jnp.maximum(jnp.minimum(p_l, t_l) + jnp.minimum(p_r, t_r) + 1.0, 1.0)
    h_i = jnp.maximum(jnp.minimum(p_b, t_b) + jnp.minimum(p_t, t_t) + 1.0, 1.0)
    area_i = w_i * h_i
    area_u = target_area + pred_area - area_i
    return -jnp.log(area_i / area_u)


if __name__ == "__main__":
    key = jax.random.PRNGKey(0)
    k1, k2, k3, k4, k5 = jax.random.split(key, 5)

    # 1) tiny batch, mean reduction, no weight (no-compaction reduce path)
    pred = jax.random.uniform(k1, (8, 4), jnp.float32, minval=0.5, maxval=5.0)
    target = jax.random.uniform(k2, (8, 4), jnp.float32, minval=0.5, maxval=5.0)
    out = jax.block_until_ready(iou_loss_pallas(pred, target, reduction="mean"))
    ref = jnp.mean(_iou_loss_ref(pred, target))
    assert jnp.allclose(out, ref, rtol=1e-5, atol=1e-5), (out, ref)

    # 2) multi-dim leading shape, weighted sum (compact weight + MXU selection)
    pred2 = jax.random.uniform(k3, (2, 300, 4), jnp.float32, minval=0.1, maxval=8.0)
    target2 = jax.random.uniform(k4, (2, 300, 4), jnp.float32, minval=0.1, maxval=8.0)
    w2 = jax.random.uniform(k5, (2, 300), jnp.float32)
    out2 = jax.block_until_ready(
        iou_loss_pallas(pred2, target2, weight=w2, reduction="sum", loss_weight=2.0))
    ref2 = 2.0 * jnp.sum(_iou_loss_ref(pred2, target2) * w2)
    assert jnp.allclose(out2, ref2, rtol=1e-4, atol=1e-4), (out2, ref2)

    # 3) per-box losses (reduction='none'), unweighted and weighted
    out3 = jax.block_until_ready(iou_loss_pallas(pred2, target2, reduction="none"))
    ref3 = _iou_loss_ref(pred2, target2)
    assert out3.shape == ref3.shape
    assert jnp.allclose(out3, ref3, rtol=1e-5, atol=1e-5)
    out3w = jax.block_until_ready(
        iou_loss_pallas(pred2, target2, weight=w2, reduction="none"))
    assert jnp.allclose(out3w, ref3 * w2, rtol=1e-5, atol=1e-5)

    # 3b) bf16 input streaming path
    pred_b = pred2.astype(jnp.bfloat16)
    target_b = target2.astype(jnp.bfloat16)
    out_b = jax.block_until_ready(iou_loss_pallas(pred_b, target_b, reduction="none"))
    ref_b = _iou_loss_ref(pred_b.astype(jnp.float32), target_b.astype(jnp.float32))
    assert jnp.allclose(out_b, ref_b, rtol=1e-5, atol=1e-5)

    # 4) multi-block grid with a ragged last block (grid of 2, last-block row mask)
    n4 = 5000
    k6, k7 = jax.random.split(k1)
    pred4 = jax.random.uniform(k6, (n4, 4), jnp.float32, minval=0.2, maxval=6.0)
    target4 = jax.random.uniform(k7, (n4, 4), jnp.float32, minval=0.2, maxval=6.0)
    out4 = jax.block_until_ready(iou_loss_pallas(pred4, target4, reduction="mean"))
    ref4 = jnp.mean(_iou_loss_ref(pred4, target4))
    assert jnp.allclose(out4, ref4, rtol=1e-4, atol=1e-4), (out4, ref4)
    out5 = jax.block_until_ready(iou_loss_pallas(pred4, target4, reduction="none"))
    ref5 = _iou_loss_ref(pred4, target4)
    assert jnp.allclose(out5, ref5, rtol=1e-5, atol=1e-5)

    print("KERNEL_OK")
</pallas_src>

<mosaic_0001>
module attributes {stable_mosaic.version = 11 : i64} {
  func.func @probe(%arg0: memref<8x128xf32, #tpu.memory_space<vmem>>, %arg1: memref<8x128xf32, #tpu.memory_space<vmem>>) attributes {dimension_semantics = [], scalar_prefetch = 0 : i64, scratch_operands = 0 : i64, tpu.core_type = #tpu.core_type<tc>} {
    %c0 = arith.constant 0 : index
    %c0_0 = arith.constant 0 : index
    %0 = vector.load %arg0[%c0, %c0_0] : memref<8x128xf32, #tpu.memory_space<vmem>>, vector<8x128xf32>
    %c1_i32 = arith.constant 1 : i32
    %1 = tpu.dynamic_rotate %0 by %c1_i32 dim 1 : vector<8x128xf32>, i32 -> vector<8x128xf32>
    %c0_1 = arith.constant 0 : index
    %c0_2 = arith.constant 0 : index
    %2 = vector.load %arg1[%c0_1, %c0_2] : memref<8x128xf32, #tpu.memory_space<vmem>>, vector<8x128xf32>
    tpu.vector_store %arg1[%c0_1, %c0_2], %1 {strides = array<i32>} : memref<8x128xf32, #tpu.memory_space<vmem>>, vector<8x128xf32>,
    return
  }
}

</mosaic_0001>

<llo_original>
// kernel: tpu_custom_call.1
$region0: #{tpu_custom_call.1}
  #allocation0 [shape = 'u32[]', space=smem, size = 0x4, offset = 0x4, fixed_abs, tag = 'smem constant byte address 0x4 - core index']
  #allocation1 [shape = 'u32[144,128]{1,0:T(1,128)}', space=vmem, size = 0x12000, scoped, tag = 'internal scratch']
  %s0 = inlined_call_operand.hbm [shape: f32[8,128], index: 0, kind: input, shape index: {}]
  %s1 = inlined_call_operand.hbm [shape: f32[8,128], index: 1, kind: output, shape index: {}]
  %s2 = sld [smem:[#allocation0]]
  $region18: #{tpu_custom_call.1} parent=0
    _
  %s4 = ssub.s32 1, %s2
  %s5 = scalar_select 0, %s4, %s2
  $region1: #{tpu_custom_call.1} parent=0
    #allocation2 [shape = 'u8[4096]{0}', space=vmem, size = 0x1000, scoped, tag = 'input window, operand 0, single buffered']
    #allocation3 [shape = 's32[1]{0}', space=sflag, size = 0x4, scoped, tag = 'scoped memory for tpu_custom_call.1']
    #allocation4 [shape = 's32[1]{0}', space=sflag, size = 0x4, scoped, tag = 'scoped memory for tpu_custom_call.1']
    #allocation5 [shape = 'u8[4096]{0}', space=vmem, size = 0x1000, scoped, tag = 'output window, operand 0, single buffered']
    %6 = vsyncpa [#allocation3], 0
    %7 = vsyncpa [#allocation4], 0
    // Predicated region
    $region2: #{tpu_custom_call.1} parent=1 // pred_check
      _
    $region3: #{tpu_custom_call.1} parent=1 // pred_check_branch
      %9 = sbr.rel (0) target = $region5
    $region4: #{tpu_custom_call.1} parent=1 // pred_region
      %s11 = ssub.s32 128, 128
      %12 = vsyncadd [#allocation3], %s11
      %s14 = sshll.u32 [#allocation2], 4
      %s15 = int_to_ptr.vmem [resolvable:$true] %s14
      %17 = dma.hbm_to_vmem [thread:$0]  %s0, 128, %s15, [#allocation3]
    $region5: #{tpu_custom_call.1} parent=1 // pred_fallthru
      _
    // Predicated region
    $region6: #{tpu_custom_call.1} parent=1 // pred_check
      _
    $region7: #{tpu_custom_call.1} parent=1 // pred_check_branch
      %19 = sbr.rel (0) target = $region9
    $region8: #{tpu_custom_call.1} parent=1 // pred_region
      %20 = dma.done [#allocation3], 128
    $region9: #{tpu_custom_call.1} parent=1 // pred_fallthru
      _
    %v21 = vld [vmem:[#allocation2] sm:$0xff]
    %22 = vrot.lane.b32.xlu0 %v21, 1
    %v23 = vpop.permute.xlu0 %22
    %24 = vst [vmem:[#allocation5] sm:$0xff] %v23
    // Predicated region
    $region10: #{tpu_custom_call.1} parent=1 // pred_check
      _
    $region11: #{tpu_custom_call.1} parent=1 // pred_check_branch
      %26 = sbr.rel (0) target = $region13
    $region12: #{tpu_custom_call.1} parent=1 // pred_region
      %s28 = ssub.s32 128, 128
      %29 = vsyncadd [#allocation4], %s28
      %s31 = sshll.u32 [#allocation5], 4
      %s32 = int_to_ptr.vmem [resolvable:$true] %s31
      %34 = dma.vmem_to_hbm [thread:$0]  %s32, 128, %s1, [#allocation4]
    $region13: #{tpu_custom_call.1} parent=1 // pred_fallthru
      _
    // Predicated region
    $region14: #{tpu_custom_call.1} parent=1 // pred_check
      _
    $region15: #{tpu_custom_call.1} parent=1 // pred_check_branch
      %36 = sbr.rel (0) target = $region17
    $region16: #{tpu_custom_call.1} parent=1 // pred_region
      %37 = dma.done [#allocation4], 128
    $region17: #{tpu_custom_call.1} parent=1 // pred_fallthru
      _
    %38 = vsyncpa [#allocation3], 1
    %39 = vsyncpa [#allocation4], 1

</llo_original>
